<compile_context>
chip_gen: v6e
topology: v6e:2x2x1
jax: 0.10.0
libtpu: 0.0.40
codegen_flags: <defaults>
</compile_context>

<pallas_src>
import functools

import jax
import jax.numpy as jnp
from jax.experimental import pallas as pl
from jax.experimental.pallas import tpu as pltpu


def _round_up(x, m):
    return ((x + m - 1) // m) * m


def _cdiv(a, b):
    return -(-a // b)


def _vmem_budget_bytes():
    """(input budget, scoped vmem limit) — generation aware, conservative default."""
    cap = 64 * 1024 * 1024                      # assume v7x-like if unknown
    try:
        info = pltpu.get_tpu_info()
        cap = int(getattr(info, "vmem_capacity_bytes", cap))
    except Exception:
        pass
    if cap >= 100 * 1024 * 1024:                # v5e / v6e: 128 MiB physical VMEM
        return 40 * 1024 * 1024, 64 * 1024 * 1024
    return 16 * 1024 * 1024, 32 * 1024 * 1024   # v7x: 64 MiB physical VMEM


def _make_in_spec(block_shape, index_map, deep):
    """Input BlockSpec, optionally with 3-deep pipelining (guarded for old JAX)."""
    if deep:
        try:
            return pl.BlockSpec(block_shape, index_map, pipeline_mode=pl.Buffered(3))
        except Exception:
            pass
    return pl.BlockSpec(block_shape, index_map)


def _dice_partial_sums_kernel(pred_ref, true_ref, inter_ref, a_ref, b_ref, *,
                              n_split, n_inner, n_total, tw, rem, ncol):
    """Accumulate per-row partial sums of (pred*true, true, pred) over H*W tiles.

    pred_ref/true_ref : (R, tw) input tiles (native dtype, upcast per chunk)
    *_ref outputs     : (R, ncol*128) f32 blocks, resident across the inner axis
    """
    i = pl.program_id(1)
    tile = pl.program_id(0) * n_inner + i        # global spatial-tile index

    # ---- init the resident output blocks at the start of each outer slice ----
    @pl.when(i == 0)
    def _init():
        inter_ref[...] = jnp.zeros_like(inter_ref)
        a_ref[...] = jnp.zeros_like(a_ref)
        b_ref[...] = jnp.zeros_like(b_ref)

    def accum_chunk(k, valid_lanes=None):
        # Fresh per-chunk loads straight from the input Refs — no big tile value
        # is ever materialized, so no vreg spills at large tw.
        pc = pred_ref[:, k * 128:(k + 1) * 128].astype(jnp.float32)
        tc = true_ref[:, k * 128:(k + 1) * 128].astype(jnp.float32)
        if valid_lanes is not None:              # static tail-chunk lane mask
            lane = jax.lax.broadcasted_iota(jnp.int32, pc.shape, 1)
            keep = lane < valid_lanes
            pc = jnp.where(keep, pc, 0.0)
            tc = jnp.where(keep, tc, 0.0)
        g = k % ncol                             # rotate over independent groups
        cs = slice(g * 128, (g + 1) * 128)
        inter_ref[:, cs] = inter_ref[:, cs] + pc * tc
        a_ref[:, cs] = a_ref[:, cs] + tc
        b_ref[:, cs] = b_ref[:, cs] + pc

    def accum_full():
        for k in range(tw // 128):
            accum_chunk(k)

    def accum_tail():
        nfull = rem // 128
        for k in range(nfull):
            accum_chunk(k)
        part = rem - nfull * 128
        if part:
            accum_chunk(nfull, valid_lanes=part)

    has_dead = n_split * n_inner > n_total       # over-covering grid tiles
    has_tail = rem < tw                          # last tile only partially valid

    cond = None
    if has_dead:
        cond = tile < n_total
    if has_tail:
        c = tile != (n_total - 1)
        cond = c if cond is None else (cond & c)

    if cond is None:
        accum_full()
    else:
        pl.when(cond)(accum_full)
        if has_tail:
            pl.when(tile == n_total - 1)(accum_tail)


def dice_loss2(y_pred, y_true, bg=0):
    """y_pred, y_true: (B, C, H, W). Returns scalar float32 loss (DiceLoss2.forward)."""
    B, C, H, W = y_pred.shape
    R = B * C
    hw = H * W
    ncol = 4                                     # independent accumulator groups

    # Lane-dense 2-D layout; keep native dtypes in HBM (upcast in-kernel).
    p2 = y_pred.reshape(R, hw)
    t2 = y_true.reshape(R, hw)

    # ---- generation-aware tile-width selection (no HBM pad copy) -------------
    budget, vmem_limit = _vmem_budget_bytes()
    out_buf_bytes = 3 * 2 * R * (ncol * 128) * 4             # 3 f32 outputs, 2 buffers
    in_lane_bytes = R * (p2.dtype.itemsize + t2.dtype.itemsize)
    avail = max(budget - out_buf_bytes, 2 * in_lane_bytes * 128)
    tw_budget = max(128, (avail // (2 * in_lane_bytes)) // 128 * 128)
    tw = min(8192, _round_up(hw, 128), tw_budget)             # multiple of 128

    n_total = _cdiv(hw, tw)                      # spatial tiles actually needed
    rem = hw - (n_total - 1) * tw                # valid lanes in the last tile
    n_split = 2 if n_total >= 2 else 1           # feed both TCs on v7x
    n_inner = _cdiv(n_total, n_split)
    has_dead = n_split * n_inner > n_total

    if has_dead:
        # Clamp the over-covering tile to an in-bounds block; its contribution
        # is skipped inside the kernel.
        in_index = lambda o, i: (0, jnp.minimum(o * n_inner + i, n_total - 1))
    else:
        in_index = lambda o, i: (0, o * n_inner + i)

    # Deeper input pipelining only when the per-core grid is long and it fits.
    deep = (n_inner >= 4) and (3 * tw * in_lane_bytes + out_buf_bytes <= budget)
    in_specs = [_make_in_spec((R, tw), in_index, deep),
                _make_in_spec((R, tw), in_index, deep)]

    out_w = n_split * ncol * 128
    out_specs = [pl.BlockSpec((R, ncol * 128), lambda o, i: (0, o))] * 3
    out_shape = [jax.ShapeDtypeStruct((R, out_w), jnp.float32)] * 3

    kernel = functools.partial(
        _dice_partial_sums_kernel,
        n_split=n_split, n_inner=n_inner, n_total=n_total,
        tw=tw, rem=rem, ncol=ncol)

    inter_p, sa_p, sb_p = pl.pallas_call(
        kernel,
        out_shape=out_shape,
        grid_spec=pltpu.PrefetchScalarGridSpec(
            num_scalar_prefetch=0,
            grid=(n_split, n_inner),
            in_specs=in_specs,
            out_specs=out_specs,
        ),
        compiler_params=pltpu.CompilerParams(
            dimension_semantics=("parallel", "arbitrary"),
            vmem_limit_bytes=vmem_limit,
        ),
    )(p2, t2)

    # ---- tiny masked dice combination over (B, C) scalars (plain JAX) --------
    inter = jnp.sum(inter_p, axis=1).reshape(B, C)
    sum_t = jnp.sum(sa_p, axis=1).reshape(B, C)
    sum_p = jnp.sum(sb_p, axis=1).reshape(B, C)

    eps = jnp.float32(1e-11)
    class_ok = jnp.arange(C, dtype=jnp.int32)[None, :] >= bg
    valid = (sum_t != 0.0) & class_ok                          # (B, C)
    dice = jnp.where(valid, 2.0 * inter / (sum_t + sum_p + eps), 0.0)

    batch_dice = jnp.sum(dice, axis=1)                         # (B,)
    cpt2 = jnp.sum(valid.astype(jnp.float32), axis=1)          # (B,)
    denom = cpt2 - jnp.float32(bg)        # PyTorch quirk: divide by (cpt2 - bg),
    batch_ok = denom != 0.0               # skip the batch element iff it is zero.
    per_batch = jnp.where(batch_ok,
                          batch_dice / jnp.where(batch_ok, denom, 1.0), 0.0)

    cpt1 = jnp.sum(batch_ok.astype(jnp.float32))
    loss = jnp.sum(per_batch)
    return jnp.where(cpt1 == 0.0, jnp.float32(-1.0),
                     1.0 - loss / jnp.where(cpt1 == 0.0, 1.0, cpt1))


def dice_loss2_ref(y_pred, y_true, bg=0):
    """Pure-Python reference mirroring the PyTorch forward exactly."""
    loss = 0.0
    cpt1 = 0
    for i in range(y_true.shape[0]):
        tmp = 0.0
        eps = 1e-11
        cpt2 = 0
        for l in range(bg, y_true.shape[1]):
            if float(jnp.sum(y_true[i, l])) == 0.0:
                continue
            a = y_true[i, l]
            b = y_pred[i, l]
            tmp += 2.0 * float(jnp.sum(a * b)) / (
                float(jnp.sum(a)) + float(jnp.sum(b)) + eps
            )
            cpt2 += 1
        if cpt2 - bg != 0:
            tmp = tmp / (cpt2 - bg)
        else:
            continue
        loss += tmp
        cpt1 += 1
    if cpt1 == 0:
        return -1.0
    return 1.0 - loss / cpt1


if __name__ == "__main__":
    key = jax.random.PRNGKey(0)
    k1, k2 = jax.random.split(key)
    B, C, H, W = 2, 4, 16, 16

    # y_pred: softmax probabilities over channels; y_true: one-hot targets.
    logits = jax.random.normal(k1, (B, C, H, W), jnp.float32)
    y_pred = jax.nn.softmax(logits, axis=1)
    labels = jax.random.randint(k2, (B, H, W), 0, C)
    y_true = jax.nn.one_hot(labels, C, axis=1, dtype=jnp.float32)  # (B, C, H, W)

    for bg in (0, 1):
        out = jax.block_until_ready(dice_loss2(y_pred, y_true, bg=bg))
        ref = dice_loss2_ref(y_pred, y_true, bg=bg)
        assert abs(float(out) - float(ref)) < 2e-5, (bg, float(out), float(ref))

    print("KERNEL_OK")
</pallas_src>

<mosaic_0001>
module attributes {stable_mosaic.version = 11 : i64} {
  func.func @_dice_partial_sums_kernel(%arg0: i32, %arg1: i32, %arg2: memref<8x256xf32, #tpu.memory_space<vmem>>, %arg3: memref<8x256xf32, #tpu.memory_space<vmem>>, %arg4: memref<8x512xf32, #tpu.memory_space<vmem>>, %arg5: memref<8x512xf32, #tpu.memory_space<vmem>>, %arg6: memref<8x512xf32, #tpu.memory_space<vmem>>) attributes {dimension_semantics = [#tpu.dimension_semantics<parallel>, #tpu.dimension_semantics<arbitrary>], iteration_bounds = array<i64: 1, 1>, scalar_prefetch = 0 : i64, scratch_operands = 0 : i64, tpu.core_type = #tpu.core_type<tc>, window_params = [{transform_indices = @transform_0, window_bounds = array<i64: 8, 256>}, {transform_indices = @transform_1, window_bounds = array<i64: 8, 256>}, {transform_indices = @transform_2, window_bounds = array<i64: 8, 512>}, {transform_indices = @transform_3, window_bounds = array<i64: 8, 512>}, {transform_indices = @transform_4, window_bounds = array<i64: 8, 512>}]} {
    %c0_i32 = arith.constant 0 : i32
    %0 = arith.cmpi eq, %arg1, %c0_i32 : i32
    %1 = arith.extui %0 : i1 to i32
    %c0_i32_0 = arith.constant 0 : i32
    %2 = arith.cmpi ne, %1, %c0_i32_0 : i32
    scf.if %2 {
      %cst = arith.constant 0.000000e+00 : f32
      %27 = vector.broadcast %cst : f32 to vector<8x512xf32>
      %c0_31 = arith.constant 0 : index
      %c0_32 = arith.constant 0 : index
      %28 = vector.load %arg4[%c0_31, %c0_32] : memref<8x512xf32, #tpu.memory_space<vmem>>, vector<8x512xf32>
      tpu.vector_store %arg4[%c0_31, %c0_32], %27 {strides = array<i32>} : memref<8x512xf32, #tpu.memory_space<vmem>>, vector<8x512xf32>,
      %cst_33 = arith.constant 0.000000e+00 : f32
      %29 = vector.broadcast %cst_33 : f32 to vector<8x512xf32>
      %c0_34 = arith.constant 0 : index
      %c0_35 = arith.constant 0 : index
      %30 = vector.load %arg5[%c0_34, %c0_35] : memref<8x512xf32, #tpu.memory_space<vmem>>, vector<8x512xf32>
      tpu.vector_store %arg5[%c0_34, %c0_35], %29 {strides = array<i32>} : memref<8x512xf32, #tpu.memory_space<vmem>>, vector<8x512xf32>,
      %cst_36 = arith.constant 0.000000e+00 : f32
      %31 = vector.broadcast %cst_36 : f32 to vector<8x512xf32>
      %c0_37 = arith.constant 0 : index
      %c0_38 = arith.constant 0 : index
      %32 = vector.load %arg6[%c0_37, %c0_38] : memref<8x512xf32, #tpu.memory_space<vmem>>, vector<8x512xf32>
      tpu.vector_store %arg6[%c0_37, %c0_38], %31 {strides = array<i32>} : memref<8x512xf32, #tpu.memory_space<vmem>>, vector<8x512xf32>,
    } else {
    }
    %c0 = arith.constant 0 : index
    %c0_1 = arith.constant 0 : index
    %3 = vector.load %arg2[%c0, %c0_1] : memref<8x256xf32, #tpu.memory_space<vmem>>, vector<8x128xf32>
    %c0_2 = arith.constant 0 : index
    %c0_3 = arith.constant 0 : index
    %4 = vector.load %arg3[%c0_2, %c0_3] : memref<8x256xf32, #tpu.memory_space<vmem>>, vector<8x128xf32>
    %c0_4 = arith.constant 0 : index
    %c0_5 = arith.constant 0 : index
    %5 = vector.load %arg4[%c0_4, %c0_5] : memref<8x512xf32, #tpu.memory_space<vmem>>, vector<8x128xf32>
    %6 = arith.mulf %3, %4 : vector<8x128xf32>
    %7 = arith.addf %5, %6 : vector<8x128xf32>
    %c0_6 = arith.constant 0 : index
    %c0_7 = arith.constant 0 : index
    %8 = vector.load %arg4[%c0_6, %c0_7] : memref<8x512xf32, #tpu.memory_space<vmem>>, vector<8x128xf32>
    tpu.vector_store %arg4[%c0_6, %c0_7], %7 {strides = array<i32>} : memref<8x512xf32, #tpu.memory_space<vmem>>, vector<8x128xf32>,
    %c0_8 = arith.constant 0 : index
    %c0_9 = arith.constant 0 : index
    %9 = vector.load %arg5[%c0_8, %c0_9] : memref<8x512xf32, #tpu.memory_space<vmem>>, vector<8x128xf32>
    %10 = arith.addf %9, %4 : vector<8x128xf32>
    %c0_10 = arith.constant 0 : index
    %c0_11 = arith.constant 0 : index
    %11 = vector.load %arg5[%c0_10, %c0_11] : memref<8x512xf32, #tpu.memory_space<vmem>>, vector<8x128xf32>
    tpu.vector_store %arg5[%c0_10, %c0_11], %10 {strides = array<i32>} : memref<8x512xf32, #tpu.memory_space<vmem>>, vector<8x128xf32>,
    %c0_12 = arith.constant 0 : index
    %c0_13 = arith.constant 0 : index
    %12 = vector.load %arg6[%c0_12, %c0_13] : memref<8x512xf32, #tpu.memory_space<vmem>>, vector<8x128xf32>
    %13 = arith.addf %12, %3 : vector<8x128xf32>
    %c0_14 = arith.constant 0 : index
    %c0_15 = arith.constant 0 : index
    %14 = vector.load %arg6[%c0_14, %c0_15] : memref<8x512xf32, #tpu.memory_space<vmem>>, vector<8x128xf32>
    tpu.vector_store %arg6[%c0_14, %c0_15], %13 {strides = array<i32>} : memref<8x512xf32, #tpu.memory_space<vmem>>, vector<8x128xf32>,
    %c0_16 = arith.constant 0 : index
    %c128 = arith.constant 128 : index
    %15 = vector.load %arg2[%c0_16, %c128] : memref<8x256xf32, #tpu.memory_space<vmem>>, vector<8x128xf32>
    %c0_17 = arith.constant 0 : index
    %c128_18 = arith.constant 128 : index
    %16 = vector.load %arg3[%c0_17, %c128_18] : memref<8x256xf32, #tpu.memory_space<vmem>>, vector<8x128xf32>
    %c0_19 = arith.constant 0 : index
    %c128_20 = arith.constant 128 : index
    %17 = vector.load %arg4[%c0_19, %c128_20] : memref<8x512xf32, #tpu.memory_space<vmem>>, vector<8x128xf32>
    %18 = arith.mulf %15, %16 : vector<8x128xf32>
    %19 = arith.addf %17, %18 : vector<8x128xf32>
    %c0_21 = arith.constant 0 : index
    %c128_22 = arith.constant 128 : index
    %20 = vector.load %arg4[%c0_21, %c128_22] : memref<8x512xf32, #tpu.memory_space<vmem>>, vector<8x128xf32>
    tpu.vector_store %arg4[%c0_21, %c128_22], %19 {strides = array<i32>} : memref<8x512xf32, #tpu.memory_space<vmem>>, vector<8x128xf32>,
    %c0_23 = arith.constant 0 : index
    %c128_24 = arith.constant 128 : index
    %21 = vector.load %arg5[%c0_23, %c128_24] : memref<8x512xf32, #tpu.memory_space<vmem>>, vector<8x128xf32>
    %22 = arith.addf %21, %16 : vector<8x128xf32>
    %c0_25 = arith.constant 0 : index
    %c128_26 = arith.constant 128 : index
    %23 = vector.load %arg5[%c0_25, %c128_26] : memref<8x512xf32, #tpu.memory_space<vmem>>, vector<8x128xf32>
    tpu.vector_store %arg5[%c0_25, %c128_26], %22 {strides = array<i32>} : memref<8x512xf32, #tpu.memory_space<vmem>>, vector<8x128xf32>,
    %c0_27 = arith.constant 0 : index
    %c128_28 = arith.constant 128 : index
    %24 = vector.load %arg6[%c0_27, %c128_28] : memref<8x512xf32, #tpu.memory_space<vmem>>, vector<8x128xf32>
    %25 = arith.addf %24, %15 : vector<8x128xf32>
    %c0_29 = arith.constant 0 : index
    %c128_30 = arith.constant 128 : index
    %26 = vector.load %arg6[%c0_29, %c128_30] : memref<8x512xf32, #tpu.memory_space<vmem>>, vector<8x128xf32>
    tpu.vector_store %arg6[%c0_29, %c128_30], %25 {strides = array<i32>} : memref<8x512xf32, #tpu.memory_space<vmem>>, vector<8x128xf32>,
    return
  }
  func.func @transform_0(%arg0: i32, %arg1: i32) -> (i32, i32) {
    %c1_i32 = arith.constant 1 : i32
    %0 = arith.muli %arg0, %c1_i32 : i32
    %1 = arith.addi %0, %arg1 : i32
    %c0_i32 = arith.constant 0 : i32
    %c0_i32_0 = arith.constant 0 : i32
    return %c0_i32, %1 : i32, i32
  }
  func.func @transform_1(%arg0: i32, %arg1: i32) -> (i32, i32) {
    %c1_i32 = arith.constant 1 : i32
    %0 = arith.muli %arg0, %c1_i32 : i32
    %1 = arith.addi %0, %arg1 : i32
    %c0_i32 = arith.constant 0 : i32
    %c0_i32_0 = arith.constant 0 : i32
    return %c0_i32, %1 : i32, i32
  }
  func.func @transform_2(%arg0: i32, %arg1: i32) -> (i32, i32) {
    %c0_i32 = arith.constant 0 : i32
    %c0_i32_0 = arith.constant 0 : i32
    return %c0_i32, %arg0 : i32, i32
  }
  func.func @transform_3(%arg0: i32, %arg1: i32) -> (i32, i32) {
    %c0_i32 = arith.constant 0 : i32
    %c0_i32_0 = arith.constant 0 : i32
    return %c0_i32, %arg0 : i32, i32
  }
  func.func @transform_4(%arg0: i32, %arg1: i32) -> (i32, i32) {
    %c0_i32 = arith.constant 0 : i32
    %c0_i32_0 = arith.constant 0 : i32
    return %c0_i32, %arg0 : i32, i32
  }
}

</mosaic_0001>

<llo_original>
// kernel: tpu_custom_call.1
$region0: #{tpu_custom_call.1}
  #allocation0 [shape = 'u32[]', space=smem, size = 0x4, offset = 0x4, fixed_abs, tag = 'smem constant byte address 0x4 - core index']
  #allocation1 [shape = 'u32[144,128]{1,0:T(1,128)}', space=vmem, size = 0x12000, scoped, tag = 'internal scratch']
  %s0 = inlined_call_operand.hbm [shape: f32[8,256], index: 0, kind: input, shape index: {}]
  %s1 = inlined_call_operand.hbm [shape: f32[8,256], index: 1, kind: input, shape index: {}]
  %s2 = inlined_call_operand.hbm [shape: f32[8,512], index: 2, kind: output, shape index: {0}]
  %s3 = inlined_call_operand.hbm [shape: f32[8,512], index: 3, kind: output, shape index: {1}]
  %s4 = inlined_call_operand.hbm [shape: f32[8,512], index: 4, kind: output, shape index: {2}]
  %5 = xla_tuple %s2, %s3, %s4
  %s6 = sld [smem:[#allocation0]]
  $region46: #{tpu_custom_call.1} parent=0
    _
  %s8 = ssub.s32 1, %s6
  %s9 = scalar_select 0, %s8, %s6
  $region1: #{tpu_custom_call.1} parent=0
    #allocation2 [shape = 'u8[8192]{0}', space=vmem, size = 0x2000, scoped, tag = 'input window, operand 0, single buffered']
    #allocation3 [shape = 's32[1]{0}', space=sflag, size = 0x4, scoped, tag = 'scoped memory for tpu_custom_call.1']
    #allocation4 [shape = 's32[1]{0}', space=sflag, size = 0x4, scoped, tag = 'scoped memory for tpu_custom_call.1']
    #allocation5 [shape = 'u8[8192]{0}', space=vmem, size = 0x2000, scoped, tag = 'input window, operand 1, single buffered']
    #allocation6 [shape = 's32[1]{0}', space=sflag, size = 0x4, scoped, tag = 'scoped memory for tpu_custom_call.1']
    #allocation7 [shape = 'u8[16384]{0}', space=vmem, size = 0x4000, scoped, tag = 'output window, operand 0, single buffered']
    #allocation8 [shape = 'u8[16384]{0}', space=vmem, size = 0x4000, scoped, tag = 'output window, operand 1, single buffered']
    #allocation9 [shape = 's32[1]{0}', space=sflag, size = 0x4, scoped, tag = 'scoped memory for tpu_custom_call.1']
    #allocation10 [shape = 'u8[16384]{0}', space=vmem, size = 0x4000, scoped, tag = 'output window, operand 2, single buffered']
    %10 = vsyncpa [#allocation3], 0
    %11 = vsyncpa [#allocation6], 0
    %12 = vsyncpa [#allocation4], 0
    %13 = vsyncpa [#allocation9], 0
    // Predicated region
    $region2: #{tpu_custom_call.1} parent=1 // pred_check
      _
    $region3: #{tpu_custom_call.1} parent=1 // pred_check_branch
      %15 = sbr.rel (0) target = $region5
    $region4: #{tpu_custom_call.1} parent=1 // pred_region
      %s16 = sadd.s32 0, 0
      %s17 = smul.u32 2, %s16
      %s19 = ssub.s32 256, 256
      %20 = vsyncadd [#allocation3], %s19
      %s21 = smul.addr %s17, 128
      %s22 = scalar_lea.hbm %s0, %s21
      %s24 = sshll.u32 [#allocation2], 4
      %s25 = int_to_ptr.vmem [resolvable:$true] %s24
      %27 = dma.hbm_to_vmem [thread:$0]  %s22, 256, %s25, [#allocation3]
    $region5: #{tpu_custom_call.1} parent=1 // pred_fallthru
      _
    // Predicated region
    $region6: #{tpu_custom_call.1} parent=1 // pred_check
      _
    $region7: #{tpu_custom_call.1} parent=1 // pred_check_branch
      %29 = sbr.rel (0) target = $region9
    $region8: #{tpu_custom_call.1} parent=1 // pred_region
      %s30 = sadd.s32 0, 0
      %s31 = smul.u32 2, %s30
      %s33 = ssub.s32 256, 256
      %34 = vsyncadd [#allocation6], %s33
      %s35 = smul.addr %s31, 128
      %s36 = scalar_lea.hbm %s1, %s35
      %s38 = sshll.u32 [#allocation5], 4
      %s39 = int_to_ptr.vmem [resolvable:$true] %s38
      %41 = dma.hbm_to_vmem [thread:$0]  %s36, 256, %s39, [#allocation6]
    $region9: #{tpu_custom_call.1} parent=1 // pred_fallthru
      _
    // Predicated region
    $region10: #{tpu_custom_call.1} parent=1 // pred_check
      _
    $region11: #{tpu_custom_call.1} parent=1 // pred_check_branch
      %43 = sbr.rel (0) target = $region13
    $region12: #{tpu_custom_call.1} parent=1 // pred_region
      %44 = dma.done [#allocation3], 256
    $region13: #{tpu_custom_call.1} parent=1 // pred_fallthru
      _
    // Predicated region
    $region14: #{tpu_custom_call.1} parent=1 // pred_check
      _
    $region15: #{tpu_custom_call.1} parent=1 // pred_check_branch
      %46 = sbr.rel (0) target = $region17
    $region16: #{tpu_custom_call.1} parent=1 // pred_region
      %47 = dma.done [#allocation6], 256
    $region17: #{tpu_custom_call.1} parent=1 // pred_fallthru
      _
    %s48 = sadd.s32 0, 0
    %s49 = smul.u32 2, %s48
    %s50 = sadd.s32 0, 0
    %s51 = smul.u32 2, %s50
    %p52 = scmp.eq.s32.totalorder 0, 0
    // Predicated region
    $region18: #{tpu_custom_call.1} parent=1 // pred_check
      %p53 = pneg %p52
    $region19: #{tpu_custom_call.1} parent=1 // pred_check_branch
      %55 = sbr.rel (%p53) target = $region21
    $region20: #{tpu_custom_call.1} parent=1 // pred_region
      %56 = vst [vmem:[#allocation7] sm:$0xff] 0.0
      %57 = vst [vmem:[#allocation7 + $0x8] sm:$0xff] 0.0
      %58 = vst [vmem:[#allocation7 + $0x10] sm:$0xff] 0.0
      %59 = vst [vmem:[#allocation7 + $0x18] sm:$0xff] 0.0
      %60 = vst [vmem:[#allocation8] sm:$0xff] 0.0
      %61 = vst [vmem:[#allocation8 + $0x8] sm:$0xff] 0.0
      %62 = vst [vmem:[#allocation8 + $0x10] sm:$0xff] 0.0
      %63 = vst [vmem:[#allocation8 + $0x18] sm:$0xff] 0.0
      %64 = vst [vmem:[#allocation10] sm:$0xff] 0.0
      %65 = vst [vmem:[#allocation10 + $0x8] sm:$0xff] 0.0
      %66 = vst [vmem:[#allocation10 + $0x10] sm:$0xff] 0.0
      %67 = vst [vmem:[#allocation10 + $0x18] sm:$0xff] 0.0
    $region21: #{tpu_custom_call.1} parent=1 // pred_fallthru
      _
    %v68 = vld [vmem:[#allocation2] sm:$0xff]
    %v69 = vld [vmem:[#allocation5] sm:$0xff]
    %v70 = vld [vmem:[#allocation7] sm:$0xff]
    %v71 = vmul.f32 %v68, %v69
    %v72 = vadd.f32 %v70, %v71
    %73 = vst [vmem:[#allocation7] sm:$0xff] %v72
    %v74 = vld [vmem:[#allocation8] sm:$0xff]
    %v75 = vadd.f32 %v74, %v69
    %76 = vst [vmem:[#allocation8] sm:$0xff] %v75
    %v77 = vld [vmem:[#allocation10] sm:$0xff]
    %v78 = vadd.f32 %v77, %v68
    %79 = vst [vmem:[#allocation10] sm:$0xff] %v78
    %v80 = vld [vmem:[#allocation2 + $0x8] sm:$0xff]
    %v81 = vld [vmem:[#allocation5 + $0x8] sm:$0xff]
    %v82 = vld [vmem:[#allocation7 + $0x8] sm:$0xff]
    %v83 = vmul.f32 %v80, %v81
    %v84 = vadd.f32 %v82, %v83
    %85 = vst [vmem:[#allocation7 + $0x8] sm:$0xff] %v84
    %v86 = vld [vmem:[#allocation8 + $0x8] sm:$0xff]
    %v87 = vadd.f32 %v86, %v81
    %88 = vst [vmem:[#allocation8 + $0x8] sm:$0xff] %v87
    %v89 = vld [vmem:[#allocation10 + $0x8] sm:$0xff]
    %v90 = vadd.f32 %v89, %v80
    %91 = vst [vmem:[#allocation10 + $0x8] sm:$0xff] %v90
    // Predicated region
    $region22: #{tpu_custom_call.1} parent=1 // pred_check
      _
    $region23: #{tpu_custom_call.1} parent=1 // pred_check_branch
      %93 = sbr.rel (0) target = $region25
    $region24: #{tpu_custom_call.1} parent=1 // pred_region
      %s95 = ssub.s32 512, 512
      %96 = vsyncadd [#allocation4], %s95
      %s98 = sshll.u32 [#allocation7], 4
      %s99 = int_to_ptr.vmem [resolvable:$true] %s98
      %101 = dma.vmem_to_hbm [thread:$0]  %s99, 512, %s2, [#allocation4]
    $region25: #{tpu_custom_call.1} parent=1 // pred_fallthru
      _
    // Predicated region
    $region26: #{tpu_custom_call.1} parent=1 // pred_check
      _
    $region27: #{tpu_custom_call.1} parent=1 // pred_check_branch
      %103 = sbr.rel (0) target = $region29
    $region28: #{tpu_custom_call.1} parent=1 // pred_region
      %s105 = ssub.s32 512, 512
      %106 = vsyncadd [#allocation9], %s105
      %s108 = sshll.u32 [#allocation8], 4
      %s109 = int_to_ptr.vmem [resolvable:$true] %s108
      %111 = dma.vmem_to_hbm [thread:$0]  %s109, 512, %s3, [#allocation9]
    $region29: #{tpu_custom_call.1} parent=1 // pred_fallthru
      _
    // Predicated region
    $region30: #{tpu_custom_call.1} parent=1 // pred_check
      _
    $region31: #{tpu_custom_call.1} parent=1 // pred_check_branch
      %113 = sbr.rel (0) target = $region33
    $region32: #{tpu_custom_call.1} parent=1 // pred_region
      %s115 = ssub.s32 512, 512
      %116 = vsyncadd [#allocation9], %s115
      %s118 = sshll.u32 [#allocation10], 4
      %s119 = int_to_ptr.vmem [resolvable:$true] %s118
      %121 = dma.vmem_to_hbm [thread:$0]  %s119, 512, %s4, [#allocation9]
    $region33: #{tpu_custom_call.1} parent=1 // pred_fallthru
      _
    // Predicated region
    $region34: #{tpu_custom_call.1} parent=1 // pred_check
      _
    $region35: #{tpu_custom_call.1} parent=1 // pred_check_branch
      %123 = sbr.rel (0) target = $region37
    $region36: #{tpu_custom_call.1} parent=1 // pred_region
      %124 = dma.done [#allocation4], 512
    $region37: #{tpu_custom_call.1} parent=1 // pred_fallthru
      _
    // Predicated region
    $region38: #{tpu_custom_call.1} parent=1 // pred_check
      _
    $region39: #{tpu_custom_call.1} parent=1 // pred_check_branch
      %126 = sbr.rel (0) target = $region41
    $region40: #{tpu_custom_call.1} parent=1 // pred_region
      %127 = dma.done [#allocation9], 512
    $region41: #{tpu_custom_call.1} parent=1 // pred_fallthru
      _
    // Predicated region
    $region42: #{tpu_custom_call.1} parent=1 // pred_check
      _
    $region43: #{tpu_custom_call.1} parent=1 // pred_check_branch
      %129 = sbr.rel (0) target = $region45
    $region44: #{tpu_custom_call.1} parent=1 // pred_region
      %130 = dma.done [#allocation9], 512
    $region45: #{tpu_custom_call.1} parent=1 // pred_fallthru
      _
    %131 = vsyncpa [#allocation3], 1
    %132 = vsyncpa [#allocation6], 1
    %133 = vsyncpa [#allocation4], 1
    %134 = vsyncpa [#allocation9], 1

</llo_original>
